<compile_context>
chip_gen: v7x
topology: tpu7x:2x2x1
jax: 0.10.0
libtpu: 0.0.40
codegen_flags: <defaults>
</compile_context>

<pallas_src>
import jax
import jax.numpy as jnp
from jax.experimental import pallas as pl
from jax.experimental.pallas import tpu as pltpu

HID = 64       # logical hidden size (matches nn.Linear(…, 64))
NCLS = 10      # logical number of classes
HID_P = 128    # hidden padded to a full lane group
NCLS_P = 128   # classes padded so output stores are lane-dense
TB_MAX = 512   # max batch-tile rows (sweet spot per HBM-roofline measurements)


def _round_up(x, m):
    return (x + m - 1) // m * m


def _choose_batch_tile(b, tb_max=TB_MAX):
    """Large, sublane-aligned batch tile; >= 2 grid steps once b >= 16 so the
    'parallel' grid axis can shard across both v7x TensorCores."""
    if b <= 8:
        return 8
    half = _round_up(pl.cdiv(b, 2), 8)
    return min(tb_max, half)


def _toynet_kernel(x_ref, w1_ref, b1_ref, w2_ref, b2_ref, w3_ref, b3_ref, o_ref):
    # x arrives f32 from HBM; cast to bf16 in-register (native MXU input).
    x = x_ref[...].astype(jnp.bfloat16)

    # h1 = relu(x @ W1 + b1)   (accumulate + VPU math in f32)
    h1 = jnp.dot(x, w1_ref[...], preferred_element_type=jnp.float32) + b1_ref[...]
    h1 = jnp.maximum(h1, 0.0)

    # h2 = relu(h1 @ W2 + b2)
    h2 = jnp.dot(h1.astype(jnp.bfloat16), w2_ref[...],
                 preferred_element_type=jnp.float32) + b2_ref[...]
    h2 = jnp.maximum(h2, 0.0)

    # do = dropout(h2 + h1)  -> identity in eval mode
    do = h2 + h1

    # logits = do @ W3 + b3  (padded class columns are exactly 0; sliced in wrapper)
    logits = jnp.dot(do.astype(jnp.bfloat16), w3_ref[...],
                     preferred_element_type=jnp.float32) + b3_ref[...]
    o_ref[...] = logits.astype(o_ref.dtype)   # bf16 store, lane-dense


def init_params(key, input_size=16, hidden=HID, num_classes=NCLS):
    """Deterministic init mimicking nn.Linear's U(-1/sqrt(fan_in), 1/sqrt(fan_in)).
    Weights stored as (in_features, out_features) so the kernel does x @ W."""
    in_feat = input_size * input_size
    ks = jax.random.split(key, 6)

    def lin(kw, kb, fan_in, fan_out):
        bound = 1.0 / jnp.sqrt(jnp.float32(fan_in))
        w = jax.random.uniform(kw, (fan_in, fan_out), jnp.float32, -bound, bound)
        b = jax.random.uniform(kb, (1, fan_out), jnp.float32, -bound, bound)
        return w, b

    w1, b1 = lin(ks[0], ks[1], in_feat, hidden)
    w2, b2 = lin(ks[2], ks[3], hidden, hidden)
    w3, b3 = lin(ks[4], ks[5], hidden, num_classes)
    return (w1, b1, w2, b2, w3, b3)


def prepare_params(params):
    """One-time zero-padding (numerically exact) and bf16 cast of weights.
    Biases stay f32 (added post-accumulation)."""
    w1, b1, w2, b2, w3, b3 = params
    in_feat = w1.shape[0]

    def pad2(a, rows, cols):
        return jnp.pad(a, ((0, rows - a.shape[0]), (0, cols - a.shape[1])))

    w1p = pad2(w1, in_feat, HID_P).astype(jnp.bfloat16)
    b1p = pad2(b1, 1, HID_P).astype(jnp.float32)
    w2p = pad2(w2, HID_P, HID_P).astype(jnp.bfloat16)
    b2p = pad2(b2, 1, HID_P).astype(jnp.float32)
    w3p = pad2(w3, HID_P, NCLS_P).astype(jnp.bfloat16)
    b3p = pad2(b3, 1, NCLS_P).astype(jnp.float32)
    return (w1p, b1p, w2p, b2p, w3p, b3p)


def mk_toynet_forward(x_nchw, prepared_params):
    w1, b1, w2, b2, w3, b3 = prepared_params
    b = x_nchw.shape[0]
    # x stays f32 in HBM; the bf16 cast happens in-kernel (no extra XLA pass).
    x2d = x_nchw.reshape(b, -1).astype(jnp.float32)
    in_feat = x2d.shape[1]

    tb = _choose_batch_tile(b)
    nb = pl.cdiv(b, tb)   # ragged last tile handled by Pallas masked load/store

    # Advisory cost hint so XLA can overlap neighboring ops around the call.
    flops = 2 * b * (in_feat * HID_P + HID_P * HID_P + HID_P * NCLS_P)
    bytes_accessed = (
        b * in_feat * 4                                           # x (f32)
        + (in_feat * HID_P + HID_P * HID_P + HID_P * NCLS_P) * 2  # weights (bf16)
        + (HID_P + HID_P + NCLS_P) * 4                            # biases (f32)
        + b * NCLS_P * 2                                          # logits out (bf16)
    )
    cost = pl.CostEstimate(flops=flops, transcendentals=0,
                           bytes_accessed=bytes_accessed)

    out = pl.pallas_call(
        _toynet_kernel,
        out_shape=jax.ShapeDtypeStruct((b, NCLS_P), jnp.bfloat16),
        grid=(nb,),
        in_specs=[
            pl.BlockSpec((tb, in_feat), lambda i: (i, 0)),        # x: tiled on batch
            pl.BlockSpec((in_feat, HID_P), lambda i: (0, 0)),     # weights/biases:
            pl.BlockSpec((1, HID_P), lambda i: (0, 0)),           # constant block idx
            pl.BlockSpec((HID_P, HID_P), lambda i: (0, 0)),       # -> VMEM-resident
            pl.BlockSpec((1, HID_P), lambda i: (0, 0)),           #    across steps
            pl.BlockSpec((HID_P, NCLS_P), lambda i: (0, 0)),
            pl.BlockSpec((1, NCLS_P), lambda i: (0, 0)),
        ],
        out_specs=pl.BlockSpec((tb, NCLS_P), lambda i: (i, 0)),
        compiler_params=pltpu.CompilerParams(
            dimension_semantics=("parallel",)),                   # shards batch on v7x
        cost_estimate=cost,
    )(x2d, w1, b1, w2, b2, w3, b3)

    # Strip padded class columns; return f32 logits (tiny slice, negligible cast).
    return out[:b, :NCLS].astype(jnp.float32)


def reference_forward(x_nchw, params):
    """Pure-JAX reference mirroring the kernel's bf16-operand / f32-accum math."""
    w1, b1, w2, b2, w3, b3 = params
    x = x_nchw.reshape(x_nchw.shape[0], -1).astype(jnp.bfloat16)
    h1 = jnp.maximum(
        jnp.dot(x, w1.astype(jnp.bfloat16),
                preferred_element_type=jnp.float32) + b1, 0.0)
    h2 = jnp.maximum(
        jnp.dot(h1.astype(jnp.bfloat16), w2.astype(jnp.bfloat16),
                preferred_element_type=jnp.float32) + b2, 0.0)
    do = h2 + h1
    logits = jnp.dot(do.astype(jnp.bfloat16), w3.astype(jnp.bfloat16),
                     preferred_element_type=jnp.float32) + b3
    # Kernel stores logits in bf16; match that rounding for comparison.
    return logits.astype(jnp.bfloat16).astype(jnp.float32)


if __name__ == "__main__":
    key = jax.random.PRNGKey(0)
    k_param, k_x, k_x2 = jax.random.split(key, 3)

    # Small shapes consistent with the module: input_size=16 -> 256 features.
    B, C, H, W = 2, 1, 16, 16
    params = init_params(k_param, input_size=16, hidden=HID, num_classes=NCLS)
    prepared = prepare_params(params)

    x = jax.random.normal(k_x, (B, C, H, W), jnp.float32)
    out = jax.block_until_ready(mk_toynet_forward(x, prepared))
    ref = reference_forward(x, params)
    assert out.shape == (B, NCLS), out.shape
    assert jnp.allclose(out, ref, atol=2e-2, rtol=2e-2), "mismatch vs reference (B=2)"

    # Second check: batch not a multiple of the tile -> exercises the ragged
    # last grid step (masked load/store) and the >=2-step parallel grid.
    B2 = 50
    x2 = jax.random.normal(k_x2, (B2, C, H, W), jnp.float32)
    out2 = jax.block_until_ready(mk_toynet_forward(x2, prepared))
    ref2 = reference_forward(x2, params)
    assert out2.shape == (B2, NCLS), out2.shape
    assert jnp.allclose(out2, ref2, atol=2e-2, rtol=2e-2), "mismatch vs reference (B=50)"

    print("KERNEL_OK")
</pallas_src>

<mosaic_0001>
module attributes {stable_mosaic.version = 11 : i64} {
  func.func @_toynet_kernel(%arg0: i32, %arg1: memref<8x256xf32, #tpu.memory_space<vmem>>, %arg2: memref<256x128xbf16, #tpu.memory_space<vmem>>, %arg3: memref<1x128xf32, #tpu.memory_space<vmem>>, %arg4: memref<128x128xbf16, #tpu.memory_space<vmem>>, %arg5: memref<1x128xf32, #tpu.memory_space<vmem>>, %arg6: memref<128x128xbf16, #tpu.memory_space<vmem>>, %arg7: memref<1x128xf32, #tpu.memory_space<vmem>>, %arg8: memref<8x128xbf16, #tpu.memory_space<vmem>>) attributes {dimension_semantics = [#tpu.dimension_semantics<parallel>], iteration_bounds = array<i64: 1>, scalar_prefetch = 0 : i64, scratch_operands = 0 : i64, tpu.core_type = #tpu.core_type<tc>, window_params = [{transform_indices = @transform_0, window_bounds = array<i64: 8, 256>}, {pipeline_mode = #tpu.pipeline_mode<synchronous>, transform_indices = @transform_1, window_bounds = array<i64: 256, 128>}, {pipeline_mode = #tpu.pipeline_mode<synchronous>, transform_indices = @transform_2, window_bounds = array<i64: 1, 128>}, {pipeline_mode = #tpu.pipeline_mode<synchronous>, transform_indices = @transform_3, window_bounds = array<i64: 128, 128>}, {pipeline_mode = #tpu.pipeline_mode<synchronous>, transform_indices = @transform_4, window_bounds = array<i64: 1, 128>}, {pipeline_mode = #tpu.pipeline_mode<synchronous>, transform_indices = @transform_5, window_bounds = array<i64: 128, 128>}, {pipeline_mode = #tpu.pipeline_mode<synchronous>, transform_indices = @transform_6, window_bounds = array<i64: 1, 128>}, {transform_indices = @transform_7, window_bounds = array<i64: 8, 128>}]} {
    %c0 = arith.constant 0 : index
    %c0_0 = arith.constant 0 : index
    %0 = vector.load %arg1[%c0, %c0_0] : memref<8x256xf32, #tpu.memory_space<vmem>>, vector<8x256xf32>
    %1 = arith.truncf %0 : vector<8x256xf32> to vector<8x256xbf16>
    %c0_1 = arith.constant 0 : index
    %c0_2 = arith.constant 0 : index
    %2 = vector.load %arg2[%c0_1, %c0_2] : memref<256x128xbf16, #tpu.memory_space<vmem>>, vector<256x128xbf16>
    %cst = arith.constant dense<0.000000e+00> : vector<8x128xf32>
    %3 = tpu.matmul %1, %2, %cst {dimension_numbers = #tpu.dot_dimension_numbers<[1], [0], [0], [1], [0, 0, 1, 1], [], []>} : vector<8x256xbf16>, vector<256x128xbf16>, vector<8x128xf32> -> vector<8x128xf32>
    %c0_3 = arith.constant 0 : index
    %c0_4 = arith.constant 0 : index
    %4 = vector.load %arg3[%c0_3, %c0_4] : memref<1x128xf32, #tpu.memory_space<vmem>>, vector<1x128xf32>
    %5 = vector.broadcast %4 : vector<1x128xf32> to vector<8x128xf32>
    %6 = arith.addf %3, %5 : vector<8x128xf32>
    %cst_5 = arith.constant 0.000000e+00 : f32
    %7 = vector.broadcast %cst_5 : f32 to vector<8x128xf32>
    %8 = arith.maximumf %6, %7 : vector<8x128xf32>
    %9 = arith.truncf %8 : vector<8x128xf32> to vector<8x128xbf16>
    %c0_6 = arith.constant 0 : index
    %c0_7 = arith.constant 0 : index
    %10 = vector.load %arg4[%c0_6, %c0_7] : memref<128x128xbf16, #tpu.memory_space<vmem>>, vector<128x128xbf16>
    %cst_8 = arith.constant dense<0.000000e+00> : vector<8x128xf32>
    %11 = tpu.matmul %9, %10, %cst_8 {dimension_numbers = #tpu.dot_dimension_numbers<[1], [0], [0], [1], [0, 0, 1, 1], [], []>} : vector<8x128xbf16>, vector<128x128xbf16>, vector<8x128xf32> -> vector<8x128xf32>
    %c0_9 = arith.constant 0 : index
    %c0_10 = arith.constant 0 : index
    %12 = vector.load %arg5[%c0_9, %c0_10] : memref<1x128xf32, #tpu.memory_space<vmem>>, vector<1x128xf32>
    %13 = vector.broadcast %12 : vector<1x128xf32> to vector<8x128xf32>
    %14 = arith.addf %11, %13 : vector<8x128xf32>
    %cst_11 = arith.constant 0.000000e+00 : f32
    %15 = vector.broadcast %cst_11 : f32 to vector<8x128xf32>
    %16 = arith.maximumf %14, %15 : vector<8x128xf32>
    %17 = arith.addf %16, %8 : vector<8x128xf32>
    %18 = arith.truncf %17 : vector<8x128xf32> to vector<8x128xbf16>
    %c0_12 = arith.constant 0 : index
    %c0_13 = arith.constant 0 : index
    %19 = vector.load %arg6[%c0_12, %c0_13] : memref<128x128xbf16, #tpu.memory_space<vmem>>, vector<128x128xbf16>
    %cst_14 = arith.constant dense<0.000000e+00> : vector<8x128xf32>
    %20 = tpu.matmul %18, %19, %cst_14 {dimension_numbers = #tpu.dot_dimension_numbers<[1], [0], [0], [1], [0, 0, 1, 1], [], []>} : vector<8x128xbf16>, vector<128x128xbf16>, vector<8x128xf32> -> vector<8x128xf32>
    %c0_15 = arith.constant 0 : index
    %c0_16 = arith.constant 0 : index
    %21 = vector.load %arg7[%c0_15, %c0_16] : memref<1x128xf32, #tpu.memory_space<vmem>>, vector<1x128xf32>
    %22 = vector.broadcast %21 : vector<1x128xf32> to vector<8x128xf32>
    %23 = arith.addf %20, %22 : vector<8x128xf32>
    %24 = arith.truncf %23 : vector<8x128xf32> to vector<8x128xbf16>
    %c0_17 = arith.constant 0 : index
    %c0_18 = arith.constant 0 : index
    %25 = vector.load %arg8[%c0_17, %c0_18] : memref<8x128xbf16, #tpu.memory_space<vmem>>, vector<8x128xbf16>
    tpu.vector_store %arg8[%c0_17, %c0_18], %24 {strides = array<i32>} : memref<8x128xbf16, #tpu.memory_space<vmem>>, vector<8x128xbf16>,
    return
  }
  func.func @transform_0(%arg0: i32) -> (i32, i32) {
    %c0_i32 = arith.constant 0 : i32
    %c0_i32_0 = arith.constant 0 : i32
    return %arg0, %c0_i32 : i32, i32
  }
  func.func @transform_1(%arg0: i32) -> (i32, i32) {
    %c0_i32 = arith.constant 0 : i32
    %c0_i32_0 = arith.constant 0 : i32
    %c0_i32_1 = arith.constant 0 : i32
    return %c0_i32, %c0_i32_0 : i32, i32
  }
  func.func @transform_2(%arg0: i32) -> (i32, i32) {
    %c0_i32 = arith.constant 0 : i32
    %c0_i32_0 = arith.constant 0 : i32
    %c0_i32_1 = arith.constant 0 : i32
    return %c0_i32, %c0_i32_0 : i32, i32
  }
  func.func @transform_3(%arg0: i32) -> (i32, i32) {
    %c0_i32 = arith.constant 0 : i32
    %c0_i32_0 = arith.constant 0 : i32
    %c0_i32_1 = arith.constant 0 : i32
    return %c0_i32, %c0_i32_0 : i32, i32
  }
  func.func @transform_4(%arg0: i32) -> (i32, i32) {
    %c0_i32 = arith.constant 0 : i32
    %c0_i32_0 = arith.constant 0 : i32
    %c0_i32_1 = arith.constant 0 : i32
    return %c0_i32, %c0_i32_0 : i32, i32
  }
  func.func @transform_5(%arg0: i32) -> (i32, i32) {
    %c0_i32 = arith.constant 0 : i32
    %c0_i32_0 = arith.constant 0 : i32
    %c0_i32_1 = arith.constant 0 : i32
    return %c0_i32, %c0_i32_0 : i32, i32
  }
  func.func @transform_6(%arg0: i32) -> (i32, i32) {
    %c0_i32 = arith.constant 0 : i32
    %c0_i32_0 = arith.constant 0 : i32
    %c0_i32_1 = arith.constant 0 : i32
    return %c0_i32, %c0_i32_0 : i32, i32
  }
  func.func @transform_7(%arg0: i32) -> (i32, i32) {
    %c0_i32 = arith.constant 0 : i32
    %c0_i32_0 = arith.constant 0 : i32
    return %arg0, %c0_i32 : i32, i32
  }
}

</mosaic_0001>

<llo_original>
// kernel: tpu_custom_call.1
$region0: #{tpu_custom_call.1}
  #allocation0 [shape = 'u32[]', space=smem, size = 0x4, offset = 0x4, fixed_abs, tag = 'smem constant byte address 0x4 - core index']
  #allocation1 [shape = 'u32[144,128]{1,0:T(1,128)}', space=vmem, size = 0x12000, scoped, tag = 'internal scratch']
  %s0 = inlined_call_operand.hbm [shape: f32[2,256], index: 0, kind: input, shape index: {}]
  %s1 = inlined_call_operand.hbm [shape: bf16[256,128], index: 1, kind: input, shape index: {}]
  %s2 = inlined_call_operand.vmem [shape: f32[1,128], index: 2, kind: input, shape index: {}]
  %s3 = inlined_call_operand.hbm [shape: bf16[128,128], index: 3, kind: input, shape index: {}]
  %s4 = inlined_call_operand.vmem [shape: f32[1,128], index: 4, kind: input, shape index: {}]
  %s5 = inlined_call_operand.hbm [shape: bf16[128,128], index: 5, kind: input, shape index: {}]
  %s6 = inlined_call_operand.vmem [shape: f32[1,128], index: 6, kind: input, shape index: {}]
  %s7 = inlined_call_operand.hbm [shape: bf16[2,128], index: 7, kind: output, shape index: {}]
  %s8 = sld [smem:[#allocation0]]
  $region54: #{tpu_custom_call.1} parent=0
    _
  %s10 = ssub.s32 1, %s8
  %s11 = scalar_select 0, %s10, %s8
  $region1: #{tpu_custom_call.1} parent=0
    #allocation2 [shape = 'u8[8192]{0}', space=vmem, size = 0x2000, scoped, tag = 'input window, operand 0, single buffered']
    #allocation3 [shape = 's32[1]{0}', space=sflag, size = 0x4, scoped, tag = 'scoped memory for tpu_custom_call.1']
    #allocation4 [shape = 's32[1]{0}', space=sflag, size = 0x4, scoped, tag = 'scoped memory for tpu_custom_call.1']
    #allocation5 [shape = 'u8[65536]{0}', space=vmem, size = 0x10000, scoped, tag = 'input window, operand 1, single buffered']
    #allocation6 [shape = 's32[1]{0}', space=sflag, size = 0x4, scoped, tag = 'scoped memory for tpu_custom_call.1']
    #allocation7 [shape = 'u8[32768]{0}', space=vmem, size = 0x8000, scoped, tag = 'input window, operand 3, single buffered']
    #allocation8 [shape = 'u8[32768]{0}', space=vmem, size = 0x8000, scoped, tag = 'input window, operand 5, single buffered']
    #allocation9 [shape = 's32[1]{0}', space=sflag, size = 0x4, scoped, tag = 'scoped memory for tpu_custom_call.1']
    #allocation10 [shape = 'u8[2048]{0}', space=vmem, size = 0x800, scoped, tag = 'output window, operand 0, single buffered']
    %12 = vsyncpa [#allocation3], 0
    %13 = vsyncpa [#allocation6], 0
    %14 = vsyncpa [#allocation9], 0
    %15 = vsyncpa [#allocation4], 0
    // Predicated region
    $region2: #{tpu_custom_call.1} parent=1 // pred_check
      _
    $region3: #{tpu_custom_call.1} parent=1 // pred_check_branch
      %17 = sbr.rel (0) target = $region5
    $region4: #{tpu_custom_call.1} parent=1 // pred_region
      %s19 = ssub.s32 256, 64
      %20 = vsyncadd [#allocation3], %s19
      %s21 = sshll.u32 [#allocation2], 4
      %s22 = int_to_ptr.vmem [resolvable:$true] %s21
      %27 = dma.hbm_to_vmem [thread:$0]  %s0, 64, %s22, [#allocation3], 64, 64, 4
    $region5: #{tpu_custom_call.1} parent=1 // pred_fallthru
      _
    // Predicated region
    $region6: #{tpu_custom_call.1} parent=1 // pred_check
      _
    $region7: #{tpu_custom_call.1} parent=1 // pred_check_branch
      %29 = sbr.rel (0) target = $region9
    $region8: #{tpu_custom_call.1} parent=1 // pred_region
      %s31 = ssub.s32 2048, 2048
      %32 = vsyncadd [#allocation6], %s31
      %s33 = sshll.u32 [#allocation5], 4
      %s34 = int_to_ptr.vmem [resolvable:$true] %s33
      %39 = dma.hbm_to_vmem [thread:$0]  %s1, 2048, %s34, [#allocation6], 64, 64, 4
    $region9: #{tpu_custom_call.1} parent=1 // pred_fallthru
      _
    // Predicated region
    $region10: #{tpu_custom_call.1} parent=1 // pred_check
      _
    $region11: #{tpu_custom_call.1} parent=1 // pred_check_branch
      %41 = sbr.rel (0) target = $region13
    $region12: #{tpu_custom_call.1} parent=1 // pred_region
      _
    $region13: #{tpu_custom_call.1} parent=1 // pred_fallthru
      _
    // Predicated region
    $region14: #{tpu_custom_call.1} parent=1 // pred_check
      _
    $region15: #{tpu_custom_call.1} parent=1 // pred_check_branch
      %43 = sbr.rel (0) target = $region17
    $region16: #{tpu_custom_call.1} parent=1 // pred_region
      %s45 = ssub.s32 1024, 1024
      %46 = vsyncadd [#allocation6], %s45
      %s47 = sshll.u32 [#allocation7], 4
      %s48 = int_to_ptr.vmem [resolvable:$true] %s47
      %53 = dma.hbm_to_vmem [thread:$0]  %s3, 1024, %s48, [#allocation6], 64, 64, 4
    $region17: #{tpu_custom_call.1} parent=1 // pred_fallthru
      _
    // Predicated region
    $region18: #{tpu_custom_call.1} parent=1 // pred_check
      _
    $region19: #{tpu_custom_call.1} parent=1 // pred_check_branch
      %55 = sbr.rel (0) target = $region21
    $region20: #{tpu_custom_call.1} parent=1 // pred_region
      _
    $region21: #{tpu_custom_call.1} parent=1 // pred_fallthru
      _
    // Predicated region
    $region22: #{tpu_custom_call.1} parent=1 // pred_check
      _
    $region23: #{tpu_custom_call.1} parent=1 // pred_check_branch
      %57 = sbr.rel (0) target = $region25
    $region24: #{tpu_custom_call.1} parent=1 // pred_region
      %s59 = ssub.s32 1024, 1024
      %60 = vsyncadd [#allocation9], %s59
      %s61 = sshll.u32 [#allocation8], 4
      %s62 = int_to_ptr.vmem [resolvable:$true] %s61
      %67 = dma.hbm_to_vmem [thread:$0]  %s5, 1024, %s62, [#allocation9], 64, 64, 4
    $region25: #{tpu_custom_call.1} parent=1 // pred_fallthru
      _
    // Predicated region
    $region26: #{tpu_custom_call.1} parent=1 // pred_check
      _
    $region27: #{tpu_custom_call.1} parent=1 // pred_check_branch
      %69 = sbr.rel (0) target = $region29
    $region28: #{tpu_custom_call.1} parent=1 // pred_region
      _
    $region29: #{tpu_custom_call.1} parent=1 // pred_fallthru
      _
    // Predicated region
    $region30: #{tpu_custom_call.1} parent=1 // pred_check
      _
    $region31: #{tpu_custom_call.1} parent=1 // pred_check_branch
      %71 = sbr.rel (0) target = $region33
    $region32: #{tpu_custom_call.1} parent=1 // pred_region
      %72 = dma.done [#allocation3], 256
    $region33: #{tpu_custom_call.1} parent=1 // pred_fallthru
      _
    // Predicated region
    $region34: #{tpu_custom_call.1} parent=1 // pred_check
      _
    $region35: #{tpu_custom_call.1} parent=1 // pred_check_branch
      %74 = sbr.rel (0) target = $region37
    $region36: #{tpu_custom_call.1} parent=1 // pred_region
      %75 = dma.done [#allocation6], 2048
    $region37: #{tpu_custom_call.1} parent=1 // pred_fallthru
      _
    // Predicated region
    $region38: #{tpu_custom_call.1} parent=1 // pred_check
      _
    $region39: #{tpu_custom_call.1} parent=1 // pred_check_branch
      %77 = sbr.rel (0) target = $region41
    $region40: #{tpu_custom_call.1} parent=1 // pred_region
      %78 = dma.done [#allocation6], 1024
    $region41: #{tpu_custom_call.1} parent=1 // pred_fallthru
      _
    // Predicated region
    $region42: #{tpu_custom_call.1} parent=1 // pred_check
      _
    $region43: #{tpu_custom_call.1} parent=1 // pred_check_branch
      %80 = sbr.rel (0) target = $region45
    $region44: #{tpu_custom_call.1} parent=1 // pred_region
      %81 = dma.done [#allocation9], 1024
    $region45: #{tpu_custom_call.1} parent=1 // pred_fallthru
      _
    %v83 = vld [vmem:[#allocation2] sm:$0xf]
    %v84 = vld [vmem:[#allocation2 + $0x4] sm:$0xf]
    %v85 = vld [vmem:[#allocation2 + $0x8] sm:$0xf]
    %v86 = vld [vmem:[#allocation2 + $0xc] sm:$0xf]
    %v91 = vcombine.low %v83, %v84
    %v92 = vcombine.low %v85, %v86
    %v94 = vunpack.c.l.s4 1983009808
    %v95 = vunpack.c.0.s8 %v94
    %v96 = vlaneseq
    %v97 = vshrl.u32 %v96, 7
    %v98 = vsub.s32 %v95, %v97
    %v99 = vrot.slane %v91, %v98
    %v101 = vunpack.c.l.s4 1983009808
    %v102 = vunpack.c.0.s8 %v101
    %v103 = vlaneseq
    %v104 = vshrl.u32 %v103, 7
    %v105 = vsub.s32 %v102, %v104
    %v106 = vrot.slane %v92, %v105
    %v107 = vcombine.low %v99, %v106
    %v108 = vcombine.high %v99, %v106
    %v111 = vpack.c.bf16 %v107, %v107
    %v112 = vpack.c.bf16 %v108, %v108
    %v113 = vld [vmem:[#allocation5] sm:$0xf]
    %v114 = vld [vmem:[#allocation5 + $0x4] sm:$0xf]
    %v115 = vld [vmem:[#allocation5 + $0x8] sm:$0xf]
    %v116 = vld [vmem:[#allocation5 + $0xc] sm:$0xf]
    %v117 = vld [vmem:[#allocation5 + $0x10] sm:$0xf]
    %v118 = vld [vmem:[#allocation5 + $0x14] sm:$0xf]
    %v119 = vld [vmem:[#allocation5 + $0x18] sm:$0xf]
    %v120 = vld [vmem:[#allocation5 + $0x1c] sm:$0xf]
    %v121 = vld [vmem:[#allocation5 + $0x20] sm:$0xf]
    %v122 = vld [vmem:[#allocation5 + $0x24] sm:$0xf]
    %v123 = vld [vmem:[#allocation5 + $0x28] sm:$0xf]
    %v124 = vld [vmem:[#allocation5 + $0x2c] sm:$0xf]
    %v125 = vld [vmem:[#allocation5 + $0x30] sm:$0xf]
    %v126 = vld [vmem:[#allocation5 + $0x34] sm:$0xf]
    %v127 = vld [vmem:[#allocation5 + $0x38] sm:$0xf]
    %v128 = vld [vmem:[#allocation5 + $0x3c] sm:$0xf]
    %v129 = vld [vmem:[#allocation5 + $0x40] sm:$0xf]
    %v130 = vld [vmem:[#allocation5 + $0x44] sm:$0xf]
    %v131 = vld [vmem:[#allocation5 + $0x48] sm:$0xf]
    %v132 = vld [vmem:[#allocation5 + $0x4c] sm:$0xf]
    %v133 = vld [vmem:[#allocation5 + $0x50] sm:$0xf]
    %v134 = vld [vmem:[#allocation5 + $0x54] sm:$0xf]
    %v135 = vld [vmem:[#allocation5 + $0x58] sm:$0xf]
    %v136 = vld [vmem:[#allocation5 + $0x5c] sm:$0xf]
    %v137 = vld [vmem:[#allocation5 + $0x60] sm:$0xf]
    %v138 = vld [vmem:[#allocation5 + $0x64] sm:$0xf]
    %v139 = vld [vmem:[#allocation5 + $0x68] sm:$0xf]
    %v140 = vld [vmem:[#allocation5 + $0x6c] sm:$0xf]
    %v141 = vld [vmem:[#allocation5 + $0x70] sm:$0xf]
    %v142 = vld [vmem:[#allocation5 + $0x74] sm:$0xf]
    %v143 = vld [vmem:[#allocation5 + $0x78] sm:$0xf]
    %v144 = vld [vmem:[#allocation5 + $0x7c] sm:$0xf]
    %v145 = vld [vmem:[%s2] sm:$0x1]
    %v147 = vlaneseq
    %v148 = vshrl.u32 %v147, 7
    %v149 = vsub.s32 0, %v148
    %v150 = vrot.slane %v145, %v149
    %v184 = vunpack.c.l.b16 %v113
    %v185 = vunpack.c.l.b16 %v114
    %v186 = vunpack.c.l.b16 %v115
    %v187 = vunpack.c.l.b16 %v116
    %v188 = vunpack.c.l.b16 %v117
    %v189 = vunpack.c.l.b16 %v118
    %v190 = vunpack.c.l.b16 %v119
    %v191 = vunpack.c.l.b16 %v120
    %v192 = vunpack.c.l.b16 %v121
    %v193 = vunpack.c.l.b16 %v122
    %v194 = vunpack.c.l.b16 %v123
    %v195 = vunpack.c.l.b16 %v124
    %v196 = vunpack.c.l.b16 %v125
    %v197 = vunpack.c.l.b16 %v126
    %v198 = vunpack.c.l.b16 %v127
    %v199 = vunpack.c.l.b16 %v128
    %v200 = vunpack.c.l.b16 %v129
    %v201 = vunpack.c.l.b16 %v130
    %v202 = vunpack.c.l.b16 %v131
    %v203 = vunpack.c.l.b16 %v132
    %v204 = vunpack.c.l.b16 %v133
    %v205 = vunpack.c.l.b16 %v134
    %v206 = vunpack.c.l.b16 %v135
    %v207 = vunpack.c.l.b16 %v136
    %v208 = vunpack.c.l.b16 %v137
    %v209 = vunpack.c.l.b16 %v138
    %v210 = vunpack.c.l.b16 %v139
    %v211 = vunpack.c.l.b16 %v140
    %v212 = vunpack.c.l.b16 %v141
    %v213 = vunpack.c.l.b16 %v142
    %v214 = vunpack.c.l.b16 %v143
    %v215 = vunpack.c.l.b16 %v144
    %v216 = vpack.c.b16 %v185, %v184
    %v217 = vpack.c.b16 %v187, %v186
    %v218 = vpack.c.b16 %v189, %v188
    %v219 = vpack.c.b16 %v191, %v190
    %v220 = vpack.c.b16 %v193, %v192
    %v221 = vpack.c.b16 %v195, %v194
    %v222 = vpack.c.b16 %v197, %v196
    %v223 = vpack.c.b16 %v199, %v198
    %v224 = vpack.c.b16 %v201, %v200
    %v225 = vpack.c.b16 %v203, %v202
    %v226 = vpack.c.b16 %v205, %v204
    %v227 = vpack.c.b16 %v207, %v206
    %v228 = vpack.c.b16 %v209, %v208
    %v229 = vpack.c.b16 %v211, %v210
    %v230 = vpack.c.b16 %v213, %v212
    %v231 = vpack.c.b16 %v215, %v214
    %248 = vmatprep.subr.bf16.mxu0 0
    %249 = vmatpush1.bf16.msra.mxu0 %v216
    %250 = vmatprep.subr.bf16.mxu0 0
    %251 = vmatpush1.bf16.msra.mxu0 %v217
    %252 = vmatprep.subr.bf16.mxu0 0
    %253 = vmatpush1.bf16.msra.mxu0 %v218
    %254 = vmatprep.subr.bf16.mxu0 0
    %255 = vmatpush1.bf16.msra.mxu0 %v219
    %256 = vmatprep.subr.bf16.mxu0 0
    %257 = vmatpush1.bf16.msra.mxu0 %v220
    %258 = vmatprep.subr.bf16.mxu0 0
    %259 = vmatpush1.bf16.msra.mxu0 %v221
    %260 = vmatprep.subr.bf16.mxu0 0
    %261 = vmatpush1.bf16.msra.mxu0 %v222
    %262 = vmatprep.subr.bf16.mxu0 0
    %263 = vmatpush1.bf16.msra.mxu0 %v223
    %264 = vmatprep.subr.bf16.mxu0 0
    %265 = vmatpush1.bf16.msra.mxu0 %v224
    %266 = vmatprep.subr.bf16.mxu0 0
    %267 = vmatpush1.bf16.msra.mxu0 %v225
    %268 = vmatprep.subr.bf16.mxu0 0
    %269 = vmatpush1.bf16.msra.mxu0 %v226
    %270 = vmatprep.subr.bf16.mxu0 0
    %271 = vmatpush1.bf16.msra.mxu0 %v227
    %272 = vmatprep.subr.bf16.mxu0 0
    %273 = vmatpush1.bf16.msra.mxu0 %v228
    %274 = vmatprep.subr.bf16.mxu0 0
    %275 = vmatpush1.bf16.msra.mxu0 %v229
    %276 = vmatprep.subr.bf16.mxu0 0
    %277 = vmatpush1.bf16.msra.mxu0 %v230
    %278 = vmatprep.subr.bf16.mxu0 0
    %279 = vmatpush1.bf16.msra.mxu0 %v231
    %280 = vmatprep.mubr.bf16.mxu0 %v112
    %281 = vmatmul.mubr.bf16.gmra.mrb[0].mxu0 %v111
    %v282 = vpop.f32.mrb[0].mxu0
    %v283 = vadd.f32 %v150, %v282
    %v284 = vpop.f32.mrb[0].mxu0
    %v285 = vpop.f32.mrb[0].mxu0
    %v286 = vpop.f32.mrb[0].mxu0
    %287 = vdwg.mxu0
    %v288 = vmax.f32 %v283, 0.0
    %v289 = vpack.c.bf16 %v288, %v288
    %v290 = vld [vmem:[#allocation7] sm:$0xf]
    %v291 = vld [vmem:[#allocation7 + $0x4] sm:$0xf]
    %v292 = vld [vmem:[#allocation7 + $0x8] sm:$0xf]
    %v293 = vld [vmem:[#allocation7 + $0xc] sm:$0xf]
    %v294 = vld [vmem:[#allocation7 + $0x10] sm:$0xf]
    %v295 = vld [vmem:[#allocation7 + $0x14] sm:$0xf]
    %v296 = vld [vmem:[#allocation7 + $0x18] sm:$0xf]
    %v297 = vld [vmem:[#allocation7 + $0x1c] sm:$0xf]
    %v298 = vld [vmem:[#allocation7 + $0x20] sm:$0xf]
    %v299 = vld [vmem:[#allocation7 + $0x24] sm:$0xf]
    %v300 = vld [vmem:[#allocation7 + $0x28] sm:$0xf]
    %v301 = vld [vmem:[#allocation7 + $0x2c] sm:$0xf]
    %v302 = vld [vmem:[#allocation7 + $0x30] sm:$0xf]
    %v303 = vld [vmem:[#allocation7 + $0x34] sm:$0xf]
    %v304 = vld [vmem:[#allocation7 + $0x38] sm:$0xf]
    %v305 = vld [vmem:[#allocation7 + $0x3c] sm:$0xf]
    %v306 = vld [vmem:[%s4] sm:$0x1]
    %v308 = vlaneseq
    %v309 = vshrl.u32 %v308, 7
    %v310 = vsub.s32 0, %v309
    %v311 = vrot.slane %v306, %v310
    %v329 = vunpack.c.l.b16 %v290
    %v330 = vunpack.c.l.b16 %v291
    %v331 = vunpack.c.l.b16 %v292
    %v332 = vunpack.c.l.b16 %v293
    %v333 = vunpack.c.l.b16 %v294
    %v334 = vunpack.c.l.b16 %v295
    %v335 = vunpack.c.l.b16 %v296
    %v336 = vunpack.c.l.b16 %v297
    %v337 = vunpack.c.l.b16 %v298
    %v338 = vunpack.c.l.b16 %v299
    %v339 = vunpack.c.l.b16 %v300
    %v340 = vunpack.c.l.b16 %v301
    %v341 = vunpack.c.l.b16 %v302
    %v342 = vunpack.c.l.b16 %v303
    %v343 = vunpack.c.l.b16 %v304
    %v344 = vunpack.c.l.b16 %v305
    %v345 = vpack.c.b16 %v330, %v329
    %v346 = vpack.c.b16 %v332, %v331
    %v347 = vpack.c.b16 %v334, %v333
    %v348 = vpack.c.b16 %v336, %v335
    %v349 = vpack.c.b16 %v338, %v337
    %v350 = vpack.c.b16 %v340, %v339
    %v351 = vpack.c.b16 %v342, %v341
    %v352 = vpack.c.b16 %v344, %v343
    %361 = vmatprep.subr.bf16.mxu0 0
    %362 = vmatpush1.bf16.msra.mxu0 %v345
    %363 = vmatprep.subr.bf16.mxu0 0
    %364 = vmatpush1.bf16.msra.mxu0 %v346
    %365 = vmatprep.subr.bf16.mxu0 0
    %366 = vmatpush1.bf16.msra.mxu0 %v347
    %367 = vmatprep.subr.bf16.mxu0 0
    %368 = vmatpush1.bf16.msra.mxu0 %v348
    %369 = vmatprep.subr.bf16.mxu0 0
    %370 = vmatpush1.bf16.msra.mxu0 %v349
    %371 = vmatprep.subr.bf16.mxu0 0
    %372 = vmatpush1.bf16.msra.mxu0 %v350
    %373 = vmatprep.subr.bf16.mxu0 0
    %374 = vmatpush1.bf16.msra.mxu0 %v351
    %375 = vmatprep.subr.bf16.mxu0 0
    %376 = vmatpush1.bf16.msra.mxu0 %v352
    %377 = vmatprep.subr.bf16.mxu0 0
    %378 = vmatpush1.bf16.msra.mxu0 0
    %379 = vmatprep.subr.bf16.mxu0 0
    %380 = vmatpush1.bf16.msra.mxu0 0
    %381 = vmatprep.subr.bf16.mxu0 0
    %382 = vmatpush1.bf16.msra.mxu0 0
    %383 = vmatprep.subr.bf16.mxu0 0
    %384 = vmatpush1.bf16.msra.mxu0 0
    %385 = vmatprep.subr.bf16.mxu0 0
    %386 = vmatpush1.bf16.msra.mxu0 0
    %387 = vmatprep.subr.bf16.mxu0 0
    %388 = vmatpush1.bf16.msra.mxu0 0
    %389 = vmatprep.subr.bf16.mxu0 0
    %390 = vmatpush1.bf16.msra.mxu0 0
    %391 = vmatprep.subr.bf16.mxu0 0
    %392 = vmatpush1.bf16.msra.mxu0 0
    %393 = vmatprep.mubr.bf16.mxu0 0
    %394 = vmatmul.mubr.bf16.gmra.mrb[0].mxu0 %v289
    %v395 = vpop.f32.mrb[0].mxu0
    %v396 = vadd.f32 %v311, %v395
    %v397 = vpop.f32.mrb[0].mxu0
    %v398 = vpop.f32.mrb[0].mxu0
    %v399 = vpop.f32.mrb[0].mxu0
    %400 = vdwg.mxu0
    %v401 = vmax.f32 %v396, 0.0
    %v402 = vadd.f32 %v401, %v288
    %v403 = vpack.c.bf16 %v402, %v402
    %v404 = vld [vmem:[#allocation8] sm:$0xf]
    %v405 = vld [vmem:[#allocation8 + $0x4] sm:$0xf]
    %v406 = vld [vmem:[#allocation8 + $0x8] sm:$0xf]
    %v407 = vld [vmem:[#allocation8 + $0xc] sm:$0xf]
    %v408 = vld [vmem:[#allocation8 + $0x10] sm:$0xf]
    %v409 = vld [vmem:[#allocation8 + $0x14] sm:$0xf]
    %v410 = vld [vmem:[#allocation8 + $0x18] sm:$0xf]
    %v411 = vld [vmem:[#allocation8 + $0x1c] sm:$0xf]
    %v412 = vld [vmem:[#allocation8 + $0x20] sm:$0xf]
    %v413 = vld [vmem:[#allocation8 + $0x24] sm:$0xf]
    %v414 = vld [vmem:[#allocation8 + $0x28] sm:$0xf]
    %v415 = vld [vmem:[#allocation8 + $0x2c] sm:$0xf]
    %v416 = vld [vmem:[#allocation8 + $0x30] sm:$0xf]
    %v417 = vld [vmem:[#allocation8 + $0x34] sm:$0xf]
    %v418 = vld [vmem:[#allocation8 + $0x38] sm:$0xf]
    %v419 = vld [vmem:[#allocation8 + $0x3c] sm:$0xf]
    %v420 = vld [vmem:[%s6] sm:$0x1]
    %v422 = vlaneseq
    %v423 = vshrl.u32 %v422, 7
    %v424 = vsub.s32 0, %v423
    %v425 = vrot.slane %v420, %v424
    %v443 = vunpack.c.l.b16 %v404
    %v444 = vunpack.c.l.b16 %v405
    %v445 = vunpack.c.l.b16 %v406
    %v446 = vunpack.c.l.b16 %v407
    %v447 = vunpack.c.l.b16 %v408
    %v448 = vunpack.c.l.b16 %v409
    %v449 = vunpack.c.l.b16 %v410
    %v450 = vunpack.c.l.b16 %v411
    %v451 = vunpack.c.l.b16 %v412
    %v452 = vunpack.c.l.b16 %v413
    %v453 = vunpack.c.l.b16 %v414
    %v454 = vunpack.c.l.b16 %v415
    %v455 = vunpack.c.l.b16 %v416
    %v456 = vunpack.c.l.b16 %v417
    %v457 = vunpack.c.l.b16 %v418
    %v458 = vunpack.c.l.b16 %v419
    %v459 = vpack.c.b16 %v444, %v443
    %v460 = vpack.c.b16 %v446, %v445
    %v461 = vpack.c.b16 %v448, %v447
    %v462 = vpack.c.b16 %v450, %v449
    %v463 = vpack.c.b16 %v452, %v451
    %v464 = vpack.c.b16 %v454, %v453
    %v465 = vpack.c.b16 %v456, %v455
    %v466 = vpack.c.b16 %v458, %v457
    %475 = vmatprep.subr.bf16.mxu0 0
    %476 = vmatpush1.bf16.msra.mxu0 %v459
    %477 = vmatprep.subr.bf16.mxu0 0
    %478 = vmatpush1.bf16.msra.mxu0 %v460
    %479 = vmatprep.subr.bf16.mxu0 0
    %480 = vmatpush1.bf16.msra.mxu0 %v461
    %481 = vmatprep.subr.bf16.mxu0 0
    %482 = vmatpush1.bf16.msra.mxu0 %v462
    %483 = vmatprep.subr.bf16.mxu0 0
    %484 = vmatpush1.bf16.msra.mxu0 %v463
    %485 = vmatprep.subr.bf16.mxu0 0
    %486 = vmatpush1.bf16.msra.mxu0 %v464
    %487 = vmatprep.subr.bf16.mxu0 0
    %488 = vmatpush1.bf16.msra.mxu0 %v465
    %489 = vmatprep.subr.bf16.mxu0 0
    %490 = vmatpush1.bf16.msra.mxu0 %v466
    %491 = vmatprep.subr.bf16.mxu0 0
    %492 = vmatpush1.bf16.msra.mxu0 0
    %493 = vmatprep.subr.bf16.mxu0 0
    %494 = vmatpush1.bf16.msra.mxu0 0
    %495 = vmatprep.subr.bf16.mxu0 0
    %496 = vmatpush1.bf16.msra.mxu0 0
    %497 = vmatprep.subr.bf16.mxu0 0
    %498 = vmatpush1.bf16.msra.mxu0 0
    %499 = vmatprep.subr.bf16.mxu0 0
    %500 = vmatpush1.bf16.msra.mxu0 0
    %501 = vmatprep.subr.bf16.mxu0 0
    %502 = vmatpush1.bf16.msra.mxu0 0
    %503 = vmatprep.subr.bf16.mxu0 0
    %504 = vmatpush1.bf16.msra.mxu0 0
    %505 = vmatprep.subr.bf16.mxu0 0
    %506 = vmatpush1.bf16.msra.mxu0 0
    %507 = vmatprep.mubr.bf16.mxu0 0
    %508 = vmatmul.mubr.bf16.gmra.mrb[0].mxu0 %v403
    %v509 = vpop.f32.mrb[0].mxu0
    %v510 = vadd.f32 %v425, %v509
    %v511 = vpop.f32.mrb[0].mxu0
    %v512 = vpop.f32.mrb[0].mxu0
    %v513 = vpop.f32.mrb[0].mxu0
    %514 = vdwg.mxu0
    %v515 = vpack.c.bf16 %v510, %v510
    %v518 = vunpack.c.l.s4 1966171168
    %v519 = vunpack.c.0.s8 %v518
    %v520 = vlaneseq
    %v521 = vshrl.u32 %v520, 7
    %v522 = vsub.s32 %v519, %v521
    %v523 = vrot.slane %v515, %v522
    %v524 = vcombine.high %v523, %v523
    %v526 = vunpack.c.l.s4 1966171168
    %v527 = vunpack.c.0.s8 %v526
    %v528 = vlaneseq
    %v529 = vshrl.u32 %v528, 7
    %v530 = vsub.s32 %v527, %v529
    %v531 = vrot.slane %v523, %v530
    %v533 = vunpack.c.l.s4 1966171168
    %v534 = vunpack.c.0.s8 %v533
    %v535 = vlaneseq
    %v536 = vshrl.u32 %v535, 7
    %v537 = vsub.s32 %v534, %v536
    %v538 = vrot.slane %v524, %v537
    %v539 = vcombine.high %v531, %v531
    %v540 = vcombine.high %v538, %v538
    %545 = vst [vmem:[#allocation10] sm:$0x1] %v531
    %546 = vst [vmem:[#allocation10 + $0x1] sm:$0x1] %v538
    %547 = vst [vmem:[#allocation10 + $0x2] sm:$0x1] %v539
    %548 = vst [vmem:[#allocation10 + $0x3] sm:$0x1] %v540
    // Predicated region
    $region46: #{tpu_custom_call.1} parent=1 // pred_check
      _
    $region47: #{tpu_custom_call.1} parent=1 // pred_check_branch
      %550 = sbr.rel (0) target = $region49
    $region48: #{tpu_custom_call.1} parent=1 // pred_region
      %s552 = ssub.s32 64, 16
      %553 = vsyncadd [#allocation4], %s552
      %s554 = sshll.u32 [#allocation10], 4
      %s555 = int_to_ptr.vmem [resolvable:$true] %s554
      %560 = dma.vmem_to_hbm [thread:$0]  %s555, 16, %s7, [#allocation4], 16, 16, 1
    $region49: #{tpu_custom_call.1} parent=1 // pred_fallthru
      _
    // Predicated region
    $region50: #{tpu_custom_call.1} parent=1 // pred_check
      _
    $region51: #{tpu_custom_call.1} parent=1 // pred_check_branch
      %562 = sbr.rel (0) target = $region53
    $region52: #{tpu_custom_call.1} parent=1 // pred_region
      %563 = dma.done [#allocation4], 64
    $region53: #{tpu_custom_call.1} parent=1 // pred_fallthru
      _
    %564 = vsyncpa [#allocation3], 1
    %565 = vsyncpa [#allocation6], 1
    %566 = vsyncpa [#allocation9], 1
    %567 = vsyncpa [#allocation4], 1

</llo_original>
